<compile_context>
chip_gen: v7x
topology: tpu7x:2x2x1
jax: 0.10.0
libtpu: 0.0.40
codegen_flags: <defaults>
</compile_context>

<pallas_src>
import functools

import jax
import jax.numpy as jnp
from jax import lax
from jax.experimental import pallas as pl
from jax.experimental.pallas import tpu as pltpu


def _gc_kernel(x_ref, wm_ref, bm_ref, w1t_ref, gamma_ref, beta_ref, w2t_ref,
               o_ref, *, hw_valid):
    bt, c, hwp = x_ref.shape
    x = x_ref[...].astype(jnp.float32)                          # (Bt, C, HWp)

    # ---- spatial pool: per-pixel logit (1x1 conv C -> 1) on the VPU --------
    logits = bm_ref[...]                                        # (1, 1, 1)
    for ci in range(c):                                         # C is small: unrolled MAC
        logits = logits + (x_ref[:, ci:ci + 1, :].astype(jnp.float32)
                           * wm_ref[:, ci:ci + 1, :])           # (Bt, 1, HWp)
    if hwp != hw_valid:  # exclude padded lanes from softmax / context
        lane = lax.broadcasted_iota(jnp.int32, (bt, 1, hwp), 2)
        logits = jnp.where(lane < hw_valid, logits, jnp.float32(-1e30))

    lmax = jnp.max(logits, axis=-1, keepdims=True)              # (Bt, 1, 1)
    e = jnp.exp(logits - lmax)                                  # (Bt, 1, HWp)
    denom = jnp.sum(e, axis=-1, keepdims=True)                  # (Bt, 1, 1)
    attn = e * pl.reciprocal(denom, approx=True)                # softmax over HW

    # context[b, c] = sum_hw x[b, c, hw] * attn[b, hw]   (lane-axis reduction)
    ctx = jnp.sum(x * attn, axis=-1)                            # (Bt, C)

    # ---- channel transform: conv1x1 -> LayerNorm(Hd) -> ReLU -> conv1x1 ----
    y1 = jnp.dot(ctx, w1t_ref[...], preferred_element_type=jnp.float32)   # (Bt, Hd)
    mu = jnp.mean(y1, axis=-1, keepdims=True)                   # (Bt, 1)
    var = jnp.mean((y1 - mu) ** 2, axis=-1, keepdims=True)      # (Bt, 1)
    y1n = (y1 - mu) * lax.rsqrt(var + 1e-5)
    y1n = y1n * gamma_ref[...] + beta_ref[...]                  # (Bt, Hd)
    y1n = jnp.maximum(y1n, 0.0)
    y2 = jnp.dot(y1n, w2t_ref[...], preferred_element_type=jnp.float32)   # (Bt, C)

    # ---- fusion ('add'): broadcast the channel correction over H*W ---------
    o_ref[...] = (x + y2[:, :, None]).astype(o_ref.dtype)


def gcblock_forward(x, wm, bm, w1, gamma, beta, w2, *,
                    block_budget_bytes=2 << 20):
    """GlobalContextBlock forward (fusion_type='add').

    x:     (B, C, H, W)   NCHW input
    wm:    (1, C)         conv_mask weight (Conv2d(C, 1, 1))
    bm:    (1, 1)         conv_mask bias
    w1:    (Hd, C)        1x1 conv C -> Hd (no bias)
    gamma: (Hd, 1)        LayerNorm weight
    beta:  (Hd, 1)        LayerNorm bias
    w2:    (C, Hd)        1x1 conv Hd -> C (no bias)
    """
    B, C, H, W = x.shape
    HW = H * W
    Hd = w1.shape[0]
    itemsize = jnp.dtype(x.dtype).itemsize

    # Lane-dense spatial axis: pad H*W up to a multiple of 128 (the kernel
    # masks the padded lanes out of the softmax and the context reduction).
    HWp = ((HW + 127) // 128) * 128
    x2 = x.reshape(B, C, HW)
    if HWp != HW:
        x2 = jnp.pad(x2, ((0, 0), (0, 0), (0, HWp - HW)))

    # Batch tile: as many batch elements per grid step as fit the per-block
    # VMEM budget (x + out double-buffered plus a few block-sized elementwise
    # temporaries stays well under the 32 MiB scoped-VMEM limit on every
    # generation, including v7x's 64 MiB physical VMEM).
    per_batch_bytes = C * HWp * itemsize
    Bt = int(max(1, min(B, block_budget_bytes // per_batch_bytes)))
    Bp = ((B + Bt - 1) // Bt) * Bt
    if Bp != B:  # padded batches are independent; results are sliced off below
        x2 = jnp.pad(x2, ((0, Bp - B), (0, 0), (0, 0)))

    # Weights, laid out for row-major (Bt, .) compute inside the kernel.
    wm3 = jnp.asarray(wm, jnp.float32).reshape(1, C, 1)
    bm3 = jnp.asarray(bm, jnp.float32).reshape(1, 1, 1)
    w1t = jnp.asarray(w1, jnp.float32).T.reshape(C, Hd)
    gamma2 = jnp.asarray(gamma, jnp.float32).reshape(1, Hd)
    beta2 = jnp.asarray(beta, jnp.float32).reshape(1, Hd)
    w2t = jnp.asarray(w2, jnp.float32).T.reshape(Hd, C)

    kernel = functools.partial(_gc_kernel, hw_valid=HW)

    out = pl.pallas_call(
        kernel,
        out_shape=jax.ShapeDtypeStruct((Bp, C, HWp), x.dtype),
        grid_spec=pltpu.PrefetchScalarGridSpec(
            num_scalar_prefetch=0,
            grid=(Bp // Bt,),
            in_specs=[
                pl.BlockSpec((Bt, C, HWp), lambda b: (b, 0, 0)),   # x batch tile
                pl.BlockSpec((1, C, 1), lambda b: (0, 0, 0)),      # conv_mask weight
                pl.BlockSpec((1, 1, 1), lambda b: (0, 0, 0)),      # conv_mask bias
                pl.BlockSpec((C, Hd), lambda b: (0, 0)),           # conv1 weight^T
                pl.BlockSpec((1, Hd), lambda b: (0, 0)),           # LayerNorm gamma
                pl.BlockSpec((1, Hd), lambda b: (0, 0)),           # LayerNorm beta
                pl.BlockSpec((Hd, C), lambda b: (0, 0)),           # conv2 weight^T
            ],
            out_specs=pl.BlockSpec((Bt, C, HWp), lambda b: (b, 0, 0)),
        ),
        compiler_params=pltpu.CompilerParams(
            # Batch tiles are independent -> shards across v7x's two TCs;
            # near-no-op on single-TC v5e/v6e.
            dimension_semantics=("parallel",),
            vmem_limit_bytes=32 << 20,
        ),
    )(x2, wm3, bm3, w1t, gamma2, beta2, w2t)

    return out[:B, :, :HW].reshape(B, C, H, W)


def gcblock_reference(x, wm, bm, w1, gamma, beta, w2):
    """Pure-JAX reference of the same semantics (for validation)."""
    B, C, H, W = x.shape
    hp = lax.Precision.HIGHEST
    xf = x.reshape(B, C, H * W).astype(jnp.float32)
    logits = jnp.einsum("c,bcs->bs", wm[0], xf, precision=hp) + bm[0, 0]
    attn = jax.nn.softmax(logits, axis=-1)
    ctx = jnp.einsum("bcs,bs->bc", xf, attn, precision=hp)
    y1 = jnp.einsum("hc,bc->bh", w1, ctx, precision=hp)
    mu = y1.mean(-1, keepdims=True)
    var = ((y1 - mu) ** 2).mean(-1, keepdims=True)
    y1n = (y1 - mu) / jnp.sqrt(var + 1e-5) * gamma[:, 0] + beta[:, 0]
    y1n = jnp.maximum(y1n, 0.0)
    y2 = jnp.einsum("ch,bh->bc", w2, y1n, precision=hp)
    return x + y2[:, :, None, None]


if __name__ == "__main__":
    # Shapes consistent with the module: in_channel=4, expan_ration=16.
    B, C, H, W = 2, 4, 16, 16
    expan_ration = 16
    Hd = int(C * expan_ration)                                   # hidden_dim = 64

    key = jax.random.PRNGKey(0)
    k_x, k_wm, k_bm, k_w1, k_w2, k_x2 = jax.random.split(key, 6)

    x = jax.random.normal(k_x, (B, C, H, W), dtype=jnp.float32)
    wm = jax.random.normal(k_wm, (1, C), dtype=jnp.float32) * 0.1     # conv_mask weight
    bm = jax.random.normal(k_bm, (1, 1), dtype=jnp.float32) * 0.1     # conv_mask bias
    w1 = jax.random.normal(k_w1, (Hd, C), dtype=jnp.float32) * 0.1    # C -> Hd (no bias)
    gamma = jnp.ones((Hd, 1), dtype=jnp.float32)                      # LayerNorm weight
    beta = jnp.zeros((Hd, 1), dtype=jnp.float32)                      # LayerNorm bias
    w2 = jax.random.normal(k_w2, (C, Hd), dtype=jnp.float32) * 0.1    # Hd -> C (no bias)

    out = jax.block_until_ready(gcblock_forward(x, wm, bm, w1, gamma, beta, w2))
    ref = gcblock_reference(x, wm, bm, w1, gamma, beta, w2)
    assert out.shape == (B, C, H, W)
    # Tolerance leaves headroom for the EUP approx-reciprocal softmax (its
    # uniform per-row scale error is almost entirely cancelled by LayerNorm).
    assert jnp.allclose(out, ref, atol=5e-4, rtol=5e-4), "mismatch vs reference"

    # Second case: non-multiple-of-128 spatial extent exercises the lane
    # padding + softmax-masking path.
    B2, H2, W2 = 3, 10, 10
    xb = jax.random.normal(k_x2, (B2, C, H2, W2), dtype=jnp.float32)
    out2 = jax.block_until_ready(gcblock_forward(xb, wm, bm, w1, gamma, beta, w2))
    ref2 = gcblock_reference(xb, wm, bm, w1, gamma, beta, w2)
    assert jnp.allclose(out2, ref2, atol=5e-4, rtol=5e-4), "mismatch (padded HW)"

    print("KERNEL_OK")
</pallas_src>

<mosaic_0001>
module attributes {stable_mosaic.version = 11 : i64} {
  func.func @_gc_kernel(%arg0: i32, %arg1: memref<2x4x256xf32, #tpu.memory_space<vmem>>, %arg2: memref<1x4x1xf32, #tpu.memory_space<vmem>>, %arg3: memref<1x1x1xf32, #tpu.memory_space<vmem>>, %arg4: memref<4x64xf32, #tpu.memory_space<vmem>>, %arg5: memref<1x64xf32, #tpu.memory_space<vmem>>, %arg6: memref<1x64xf32, #tpu.memory_space<vmem>>, %arg7: memref<64x4xf32, #tpu.memory_space<vmem>>, %arg8: memref<2x4x256xf32, #tpu.memory_space<vmem>>) attributes {dimension_semantics = [#tpu.dimension_semantics<parallel>], iteration_bounds = array<i64: 1>, scalar_prefetch = 0 : i64, scratch_operands = 0 : i64, tpu.core_type = #tpu.core_type<tc>, window_params = [{transform_indices = @transform_0, window_bounds = array<i64: 2, 4, 256>}, {pipeline_mode = #tpu.pipeline_mode<synchronous>, transform_indices = @transform_1, window_bounds = array<i64: 1, 4, 1>}, {pipeline_mode = #tpu.pipeline_mode<synchronous>, transform_indices = @transform_2, window_bounds = array<i64: 1, 1, 1>}, {pipeline_mode = #tpu.pipeline_mode<synchronous>, transform_indices = @transform_3, window_bounds = array<i64: 4, 64>}, {pipeline_mode = #tpu.pipeline_mode<synchronous>, transform_indices = @transform_4, window_bounds = array<i64: 1, 64>}, {pipeline_mode = #tpu.pipeline_mode<synchronous>, transform_indices = @transform_5, window_bounds = array<i64: 1, 64>}, {pipeline_mode = #tpu.pipeline_mode<synchronous>, transform_indices = @transform_6, window_bounds = array<i64: 64, 4>}, {transform_indices = @transform_7, window_bounds = array<i64: 2, 4, 256>}]} {
    %c0 = arith.constant 0 : index
    %c0_0 = arith.constant 0 : index
    %c0_1 = arith.constant 0 : index
    %0 = vector.load %arg1[%c0, %c0_0, %c0_1] : memref<2x4x256xf32, #tpu.memory_space<vmem>>, vector<2x4x256xf32>
    %c0_2 = arith.constant 0 : index
    %c0_3 = arith.constant 0 : index
    %c0_4 = arith.constant 0 : index
    %1 = vector.load %arg3[%c0_2, %c0_3, %c0_4] : memref<1x1x1xf32, #tpu.memory_space<vmem>>, vector<1x1x1xf32>
    %c0_5 = arith.constant 0 : index
    %c0_6 = arith.constant 0 : index
    %c0_7 = arith.constant 0 : index
    %2 = vector.load %arg1[%c0_5, %c0_6, %c0_7] : memref<2x4x256xf32, #tpu.memory_space<vmem>>, vector<2x1x256xf32>
    %c0_8 = arith.constant 0 : index
    %c0_9 = arith.constant 0 : index
    %c0_10 = arith.constant 0 : index
    %3 = vector.load %arg2[%c0_8, %c0_9, %c0_10] : memref<1x4x1xf32, #tpu.memory_space<vmem>>, vector<1x1x1xf32>
    %4 = vector.broadcast %3 : vector<1x1x1xf32> to vector<2x1x256xf32>
    %5 = arith.mulf %2, %4 : vector<2x1x256xf32>
    %6 = vector.broadcast %1 : vector<1x1x1xf32> to vector<2x1x256xf32>
    %7 = arith.addf %6, %5 : vector<2x1x256xf32>
    %c0_11 = arith.constant 0 : index
    %c1 = arith.constant 1 : index
    %c0_12 = arith.constant 0 : index
    %8 = vector.load %arg1[%c0_11, %c1, %c0_12] : memref<2x4x256xf32, #tpu.memory_space<vmem>>, vector<2x1x256xf32>
    %c0_13 = arith.constant 0 : index
    %c1_14 = arith.constant 1 : index
    %c0_15 = arith.constant 0 : index
    %9 = vector.load %arg2[%c0_13, %c1_14, %c0_15] : memref<1x4x1xf32, #tpu.memory_space<vmem>>, vector<1x1x1xf32>
    %10 = vector.broadcast %9 : vector<1x1x1xf32> to vector<2x1x256xf32>
    %11 = arith.mulf %8, %10 : vector<2x1x256xf32>
    %12 = arith.addf %7, %11 : vector<2x1x256xf32>
    %c0_16 = arith.constant 0 : index
    %c2 = arith.constant 2 : index
    %c0_17 = arith.constant 0 : index
    %13 = vector.load %arg1[%c0_16, %c2, %c0_17] : memref<2x4x256xf32, #tpu.memory_space<vmem>>, vector<2x1x256xf32>
    %c0_18 = arith.constant 0 : index
    %c2_19 = arith.constant 2 : index
    %c0_20 = arith.constant 0 : index
    %14 = vector.load %arg2[%c0_18, %c2_19, %c0_20] : memref<1x4x1xf32, #tpu.memory_space<vmem>>, vector<1x1x1xf32>
    %15 = vector.broadcast %14 : vector<1x1x1xf32> to vector<2x1x256xf32>
    %16 = arith.mulf %13, %15 : vector<2x1x256xf32>
    %17 = arith.addf %12, %16 : vector<2x1x256xf32>
    %c0_21 = arith.constant 0 : index
    %c3 = arith.constant 3 : index
    %c0_22 = arith.constant 0 : index
    %18 = vector.load %arg1[%c0_21, %c3, %c0_22] : memref<2x4x256xf32, #tpu.memory_space<vmem>>, vector<2x1x256xf32>
    %c0_23 = arith.constant 0 : index
    %c3_24 = arith.constant 3 : index
    %c0_25 = arith.constant 0 : index
    %19 = vector.load %arg2[%c0_23, %c3_24, %c0_25] : memref<1x4x1xf32, #tpu.memory_space<vmem>>, vector<1x1x1xf32>
    %20 = vector.broadcast %19 : vector<1x1x1xf32> to vector<2x1x256xf32>
    %21 = arith.mulf %18, %20 : vector<2x1x256xf32>
    %22 = arith.addf %17, %21 : vector<2x1x256xf32>
    %cst = arith.constant dense<0xFF800000> : vector<2x1xf32>
    %23 = vector.multi_reduction <maximumf>, %22, %cst [2] : vector<2x1x256xf32> to vector<2x1xf32>
    %24 = vector.shape_cast %23 : vector<2x1xf32> to vector<2x1x1xf32>
    %25 = vector.broadcast %24 : vector<2x1x1xf32> to vector<2x1x256xf32>
    %26 = arith.subf %22, %25 : vector<2x1x256xf32>
    %27 = math.exp %26 : vector<2x1x256xf32>
    %cst_26 = arith.constant dense<0.000000e+00> : vector<2x1xf32>
    %28 = vector.multi_reduction <add>, %27, %cst_26 [2] : vector<2x1x256xf32> to vector<2x1xf32>
    %29 = vector.shape_cast %28 : vector<2x1xf32> to vector<2x1x1xf32>
    %30 = tpu.reciprocal %29 {approx = true} : vector<2x1x1xf32> -> vector<2x1x1xf32>
    %31 = vector.broadcast %30 : vector<2x1x1xf32> to vector<2x1x256xf32>
    %32 = arith.mulf %27, %31 : vector<2x1x256xf32>
    %33 = vector.broadcast %32 : vector<2x1x256xf32> to vector<2x4x256xf32>
    %34 = arith.mulf %0, %33 : vector<2x4x256xf32>
    %cst_27 = arith.constant dense<0.000000e+00> : vector<2x4xf32>
    %35 = vector.multi_reduction <add>, %34, %cst_27 [2] : vector<2x4x256xf32> to vector<2x4xf32>
    %c0_28 = arith.constant 0 : index
    %c0_29 = arith.constant 0 : index
    %36 = vector.load %arg4[%c0_28, %c0_29] : memref<4x64xf32, #tpu.memory_space<vmem>>, vector<4x64xf32>
    %cst_30 = arith.constant dense<0.000000e+00> : vector<2x64xf32>
    %37 = tpu.matmul %35, %36, %cst_30 {dimension_numbers = #tpu.dot_dimension_numbers<[1], [0], [0], [1], [0, 0, 1, 1], [], []>} : vector<2x4xf32>, vector<4x64xf32>, vector<2x64xf32> -> vector<2x64xf32>
    %cst_31 = arith.constant dense<0.000000e+00> : vector<2xf32>
    %38 = vector.multi_reduction <add>, %37, %cst_31 [1] : vector<2x64xf32> to vector<2xf32>
    %39 = vector.shape_cast %38 : vector<2xf32> to vector<2x1xf32>
    %cst_32 = arith.constant 6.400000e+01 : f32
    %40 = vector.broadcast %cst_32 : f32 to vector<2x1xf32>
    %41 = arith.divf %39, %40 : vector<2x1xf32>
    %42 = vector.broadcast %41 : vector<2x1xf32> to vector<2x64xf32>
    %43 = arith.subf %37, %42 : vector<2x64xf32>
    %44 = arith.mulf %43, %43 : vector<2x64xf32>
    %cst_33 = arith.constant dense<0.000000e+00> : vector<2xf32>
    %45 = vector.multi_reduction <add>, %44, %cst_33 [1] : vector<2x64xf32> to vector<2xf32>
    %46 = vector.shape_cast %45 : vector<2xf32> to vector<2x1xf32>
    %cst_34 = arith.constant 6.400000e+01 : f32
    %47 = vector.broadcast %cst_34 : f32 to vector<2x1xf32>
    %48 = arith.divf %46, %47 : vector<2x1xf32>
    %49 = vector.broadcast %41 : vector<2x1xf32> to vector<2x64xf32>
    %50 = arith.subf %37, %49 : vector<2x64xf32>
    %cst_35 = arith.constant 9.99999974E-6 : f32
    %51 = vector.broadcast %cst_35 : f32 to vector<2x1xf32>
    %52 = arith.addf %48, %51 : vector<2x1xf32>
    %53 = math.rsqrt %52 : vector<2x1xf32>
    %54 = vector.broadcast %53 : vector<2x1xf32> to vector<2x64xf32>
    %55 = arith.mulf %50, %54 : vector<2x64xf32>
    %c0_36 = arith.constant 0 : index
    %c0_37 = arith.constant 0 : index
    %56 = vector.load %arg5[%c0_36, %c0_37] : memref<1x64xf32, #tpu.memory_space<vmem>>, vector<1x64xf32>
    %57 = vector.broadcast %56 : vector<1x64xf32> to vector<2x64xf32>
    %58 = arith.mulf %55, %57 : vector<2x64xf32>
    %c0_38 = arith.constant 0 : index
    %c0_39 = arith.constant 0 : index
    %59 = vector.load %arg6[%c0_38, %c0_39] : memref<1x64xf32, #tpu.memory_space<vmem>>, vector<1x64xf32>
    %60 = vector.broadcast %59 : vector<1x64xf32> to vector<2x64xf32>
    %61 = arith.addf %58, %60 : vector<2x64xf32>
    %cst_40 = arith.constant 0.000000e+00 : f32
    %62 = vector.broadcast %cst_40 : f32 to vector<2x64xf32>
    %63 = arith.maximumf %61, %62 : vector<2x64xf32>
    %c0_41 = arith.constant 0 : index
    %c0_42 = arith.constant 0 : index
    %64 = vector.load %arg7[%c0_41, %c0_42] : memref<64x4xf32, #tpu.memory_space<vmem>>, vector<64x4xf32>
    %cst_43 = arith.constant dense<0.000000e+00> : vector<2x4xf32>
    %65 = tpu.matmul %63, %64, %cst_43 {dimension_numbers = #tpu.dot_dimension_numbers<[1], [0], [0], [1], [0, 0, 1, 1], [], []>} : vector<2x64xf32>, vector<64x4xf32>, vector<2x4xf32> -> vector<2x4xf32>
    %66 = vector.shape_cast %65 : vector<2x4xf32> to vector<2x4x1xf32>
    %67 = vector.broadcast %66 : vector<2x4x1xf32> to vector<2x4x256xf32>
    %68 = arith.addf %0, %67 : vector<2x4x256xf32>
    %c0_44 = arith.constant 0 : index
    %c0_45 = arith.constant 0 : index
    %c0_46 = arith.constant 0 : index
    %69 = vector.load %arg8[%c0_44, %c0_45, %c0_46] : memref<2x4x256xf32, #tpu.memory_space<vmem>>, vector<2x4x256xf32>
    tpu.vector_store %arg8[%c0_44, %c0_45, %c0_46], %68 {strides = array<i32>} : memref<2x4x256xf32, #tpu.memory_space<vmem>>, vector<2x4x256xf32>,
    return
  }
  func.func @transform_0(%arg0: i32) -> (i32, i32, i32) {
    %c0_i32 = arith.constant 0 : i32
    %c0_i32_0 = arith.constant 0 : i32
    %c0_i32_1 = arith.constant 0 : i32
    return %arg0, %c0_i32, %c0_i32_0 : i32, i32, i32
  }
  func.func @transform_1(%arg0: i32) -> (i32, i32, i32) {
    %c0_i32 = arith.constant 0 : i32
    %c0_i32_0 = arith.constant 0 : i32
    %c0_i32_1 = arith.constant 0 : i32
    %c0_i32_2 = arith.constant 0 : i32
    return %c0_i32, %c0_i32_0, %c0_i32_1 : i32, i32, i32
  }
  func.func @transform_2(%arg0: i32) -> (i32, i32, i32) {
    %c0_i32 = arith.constant 0 : i32
    %c0_i32_0 = arith.constant 0 : i32
    %c0_i32_1 = arith.constant 0 : i32
    %c0_i32_2 = arith.constant 0 : i32
    return %c0_i32, %c0_i32_0, %c0_i32_1 : i32, i32, i32
  }
  func.func @transform_3(%arg0: i32) -> (i32, i32) {
    %c0_i32 = arith.constant 0 : i32
    %c0_i32_0 = arith.constant 0 : i32
    %c0_i32_1 = arith.constant 0 : i32
    return %c0_i32, %c0_i32_0 : i32, i32
  }
  func.func @transform_4(%arg0: i32) -> (i32, i32) {
    %c0_i32 = arith.constant 0 : i32
    %c0_i32_0 = arith.constant 0 : i32
    %c0_i32_1 = arith.constant 0 : i32
    return %c0_i32, %c0_i32_0 : i32, i32
  }
  func.func @transform_5(%arg0: i32) -> (i32, i32) {
    %c0_i32 = arith.constant 0 : i32
    %c0_i32_0 = arith.constant 0 : i32
    %c0_i32_1 = arith.constant 0 : i32
    return %c0_i32, %c0_i32_0 : i32, i32
  }
  func.func @transform_6(%arg0: i32) -> (i32, i32) {
    %c0_i32 = arith.constant 0 : i32
    %c0_i32_0 = arith.constant 0 : i32
    %c0_i32_1 = arith.constant 0 : i32
    return %c0_i32, %c0_i32_0 : i32, i32
  }
  func.func @transform_7(%arg0: i32) -> (i32, i32, i32) {
    %c0_i32 = arith.constant 0 : i32
    %c0_i32_0 = arith.constant 0 : i32
    %c0_i32_1 = arith.constant 0 : i32
    return %arg0, %c0_i32, %c0_i32_0 : i32, i32, i32
  }
}

</mosaic_0001>

<llo_original>
// kernel: tpu_custom_call.1
$region0: #{tpu_custom_call.1}
  #allocation0 [shape = 'u32[]', space=smem, size = 0x4, offset = 0x4, fixed_abs, tag = 'smem constant byte address 0x4 - core index']
  #allocation1 [shape = 'u32[144,128]{1,0:T(1,128)}', space=vmem, size = 0x12000, scoped, tag = 'internal scratch']
  #allocation2 [shape = 'f32[1,1,1]{2,1,0:T(1,128)S(1)}', space=vmem, size = 0x200, scoped, tag = 'scoped memory for tpu_custom_call.1']
  %s0 = inlined_call_operand.vmem [shape: f32[2,4,256], index: 0, kind: input, shape index: {}]
  %s1 = inlined_call_operand.vmem [shape: f32[1,4,1], index: 1, kind: input, shape index: {}]
  %s2 = inlined_call_operand.<no memory space> [shape: f32[1,1,1], index: 2, kind: input, shape index: {}]
  %s3 = inlined_call_operand.vmem [shape: f32[4,64], index: 3, kind: input, shape index: {}]
  %s4 = inlined_call_operand.vmem [shape: f32[1,64], index: 4, kind: input, shape index: {}]
  %s5 = inlined_call_operand.vmem [shape: f32[1,64], index: 5, kind: input, shape index: {}]
  %s6 = inlined_call_operand.vmem [shape: f32[64,4], index: 6, kind: input, shape index: {}]
  %s7 = inlined_call_operand.hbm [shape: f32[2,4,256], index: 7, kind: output, shape index: {}]
  %s8 = sld [smem:[#allocation0]]
  $region38: #{tpu_custom_call.1} parent=0
    _
  %s10 = ssub.s32 1, %s8
  %s11 = scalar_select 0, %s10, %s8
  %v12 = vstv %s2
  %13 = vst [vmem:[#allocation2] sm:$0x1] %v12
  $region1: #{tpu_custom_call.1} parent=0
    #allocation3 [shape = 'u8[8192]{0}', space=vmem, size = 0x2000, scoped, tag = 'output window, operand 0, single buffered']
    #allocation4 [shape = 's32[1]{0}', space=sflag, size = 0x4, scoped, tag = 'scoped memory for tpu_custom_call.1']
    %14 = vsyncpa [#allocation4], 0
    // Predicated region
    $region2: #{tpu_custom_call.1} parent=1 // pred_check
      _
    $region3: #{tpu_custom_call.1} parent=1 // pred_check_branch
      %16 = sbr.rel (0) target = $region5
    $region4: #{tpu_custom_call.1} parent=1 // pred_region
      _
    $region5: #{tpu_custom_call.1} parent=1 // pred_fallthru
      _
    // Predicated region
    $region6: #{tpu_custom_call.1} parent=1 // pred_check
      _
    $region7: #{tpu_custom_call.1} parent=1 // pred_check_branch
      %18 = sbr.rel (0) target = $region9
    $region8: #{tpu_custom_call.1} parent=1 // pred_region
      _
    $region9: #{tpu_custom_call.1} parent=1 // pred_fallthru
      _
    // Predicated region
    $region10: #{tpu_custom_call.1} parent=1 // pred_check
      _
    $region11: #{tpu_custom_call.1} parent=1 // pred_check_branch
      %20 = sbr.rel (0) target = $region13
    $region12: #{tpu_custom_call.1} parent=1 // pred_region
      _
    $region13: #{tpu_custom_call.1} parent=1 // pred_fallthru
      _
    // Predicated region
    $region14: #{tpu_custom_call.1} parent=1 // pred_check
      _
    $region15: #{tpu_custom_call.1} parent=1 // pred_check_branch
      %22 = sbr.rel (0) target = $region17
    $region16: #{tpu_custom_call.1} parent=1 // pred_region
      _
    $region17: #{tpu_custom_call.1} parent=1 // pred_fallthru
      _
    // Predicated region
    $region18: #{tpu_custom_call.1} parent=1 // pred_check
      _
    $region19: #{tpu_custom_call.1} parent=1 // pred_check_branch
      %24 = sbr.rel (0) target = $region21
    $region20: #{tpu_custom_call.1} parent=1 // pred_region
      _
    $region21: #{tpu_custom_call.1} parent=1 // pred_fallthru
      _
    // Predicated region
    $region22: #{tpu_custom_call.1} parent=1 // pred_check
      _
    $region23: #{tpu_custom_call.1} parent=1 // pred_check_branch
      %26 = sbr.rel (0) target = $region25
    $region24: #{tpu_custom_call.1} parent=1 // pred_region
      _
    $region25: #{tpu_custom_call.1} parent=1 // pred_fallthru
      _
    // Predicated region
    $region26: #{tpu_custom_call.1} parent=1 // pred_check
      _
    $region27: #{tpu_custom_call.1} parent=1 // pred_check_branch
      %28 = sbr.rel (0) target = $region29
    $region28: #{tpu_custom_call.1} parent=1 // pred_region
      _
    $region29: #{tpu_custom_call.1} parent=1 // pred_fallthru
      _
    %v29 = vld [vmem:[%s0] sm:$0xff]
    %v30 = vld [vmem:[%s0 + $0x8] sm:$0xff]
    %v31 = vld [vmem:[#allocation2] sm:$0x1]
    %v32 = vld [vmem:[%s0] ss:$4 sm:$0x3]
    %s33 = scalar_lea.vmem %s0, 8
    %v34 = vld [vmem:[%s33] ss:$4 sm:$0x3]
    %v35 = vld [vmem:[%s1] sm:$0x1]
    %37 = vset.pattern.permute.xlu0 0
    %38 = vperm.xlu0 %37, %v35
    %v39 = vpop.permute.xlu0 %38
    %v40 = vlaneseq
    %v41 = vshrl.u32 %v40, 7
    %v42 = vsub.s32 0, %v41
    %v43 = vrot.slane %v39, %v42
    %v45 = vmul.f32 %v32, %v43
    %v46 = vmul.f32 %v34, %v43
    %48 = vset.pattern.permute.xlu0 0
    %49 = vperm.xlu0 %48, %v31
    %v50 = vpop.permute.xlu0 %49
    %v52 = vlaneseq
    %v53 = vshrl.u32 %v52, 7
    %v54 = vsub.s32 0, %v53
    %v55 = vrot.slane %v50, %v54
    %v56 = vadd.f32 %v55, %v45
    %v57 = vadd.f32 %v55, %v46
    %s58 = scalar_lea.vmem %s0, 1
    %v59 = vld [vmem:[%s58] ss:$4 sm:$0x3]
    %s60 = scalar_lea.vmem %s0, 9
    %v61 = vld [vmem:[%s60] ss:$4 sm:$0x3]
    %v62 = vld [vmem:[%s1 + $0x1] sm:$0x1]
    %64 = vset.pattern.permute.xlu0 0
    %65 = vperm.xlu0 %64, %v62
    %v66 = vpop.permute.xlu0 %65
    %v67 = vlaneseq
    %v68 = vshrl.u32 %v67, 7
    %v69 = vsub.s32 0, %v68
    %v70 = vrot.slane %v66, %v69
    %v72 = vmul.f32 %v59, %v70
    %v73 = vmul.f32 %v61, %v70
    %v74 = vadd.f32 %v56, %v72
    %v75 = vadd.f32 %v57, %v73
    %s76 = scalar_lea.vmem %s0, 2
    %v77 = vld [vmem:[%s76] ss:$4 sm:$0x3]
    %s78 = scalar_lea.vmem %s0, 10
    %v79 = vld [vmem:[%s78] ss:$4 sm:$0x3]
    %v80 = vld [vmem:[%s1 + $0x2] sm:$0x1]
    %82 = vset.pattern.permute.xlu0 0
    %83 = vperm.xlu0 %82, %v80
    %v84 = vpop.permute.xlu0 %83
    %v85 = vlaneseq
    %v86 = vshrl.u32 %v85, 7
    %v87 = vsub.s32 0, %v86
    %v88 = vrot.slane %v84, %v87
    %v90 = vmul.f32 %v77, %v88
    %v91 = vmul.f32 %v79, %v88
    %v92 = vadd.f32 %v74, %v90
    %v93 = vadd.f32 %v75, %v91
    %s94 = scalar_lea.vmem %s0, 3
    %v95 = vld [vmem:[%s94] ss:$4 sm:$0x3]
    %s96 = scalar_lea.vmem %s0, 11
    %v97 = vld [vmem:[%s96] ss:$4 sm:$0x3]
    %v98 = vld [vmem:[%s1 + $0x3] sm:$0x1]
    %100 = vset.pattern.permute.xlu0 0
    %101 = vperm.xlu0 %100, %v98
    %v102 = vpop.permute.xlu0 %101
    %v103 = vlaneseq
    %v104 = vshrl.u32 %v103, 7
    %v105 = vsub.s32 0, %v104
    %v106 = vrot.slane %v102, %v105
    %v108 = vmul.f32 %v95, %v106
    %v109 = vmul.f32 %v97, %v106
    %v110 = vadd.f32 %v92, %v108
    %v111 = vadd.f32 %v93, %v109
    %v114 = vlaneseq
    %v115 = vshrl.u32 %v114, 7
    %v116 = vsub.s32 0, %v115
    %v117 = vrot.slane %v110, %v116
    %v118 = vlaneseq
    %v119 = vshrl.u32 %v118, 7
    %v120 = vsub.s32 1, %v119
    %v121 = vrot.slane %v110, %v120
    %v122 = vlaneseq
    %v123 = vshrl.u32 %v122, 7
    %v124 = vsub.s32 0, %v123
    %v125 = vrot.slane %v111, %v124
    %v126 = vlaneseq
    %v127 = vshrl.u32 %v126, 7
    %v128 = vsub.s32 1, %v127
    %v129 = vrot.slane %v111, %v128
    %vm134 = vcmask 1040384
    %v135 = vsel %vm134, %v117, -inf
    %v136 = vsel %vm134, %v121, -inf
    %v137 = vmax.f32 %v135, %v136
    %138 = vmax.xlane.f32.xlu0 %v137
    %v139 = vpop.xlane.xlu0 %138
    %v140 = vsel %vm134, %v125, -inf
    %v141 = vsel %vm134, %v129, -inf
    %v142 = vmax.f32 %v140, %v141
    %143 = vmax.xlane.f32.xlu0 %v142
    %v144 = vpop.xlane.xlu0 %143
    %v147 = vlaneseq
    %v148 = vshrl.u32 %v147, 7
    %v149 = vsub.s32 0, %v148
    %v150 = vrot.slane %v139, %v149
    %v151 = vlaneseq
    %v152 = vshrl.u32 %v151, 7
    %v153 = vsub.s32 0, %v152
    %v154 = vrot.slane %v144, %v153
    %v157 = vsub.f32 %v110, %v150
    %v158 = vsub.f32 %v111, %v154
    %v159 = vmul.f32 %v157, 1.442695
    %v160 = vpow.pop %v159
    %v161 = vmul.f32 %v158, 1.442695
    %v162 = vpow.pop %v161
    %v165 = vlaneseq
    %v166 = vshrl.u32 %v165, 7
    %v167 = vsub.s32 0, %v166
    %v168 = vrot.slane %v160, %v167
    %v169 = vlaneseq
    %v170 = vshrl.u32 %v169, 7
    %v171 = vsub.s32 1, %v170
    %v172 = vrot.slane %v160, %v171
    %v173 = vlaneseq
    %v174 = vshrl.u32 %v173, 7
    %v175 = vsub.s32 0, %v174
    %v176 = vrot.slane %v162, %v175
    %v177 = vlaneseq
    %v178 = vshrl.u32 %v177, 7
    %v179 = vsub.s32 1, %v178
    %v180 = vrot.slane %v162, %v179
    %v185 = vsel %vm134, %v168, 0.0
    %v186 = vsel %vm134, %v172, 0.0
    %v187 = vadd.f32 %v185, %v186
    %188 = vadd.xlane.f32.xlu0 %v187
    %v189 = vpop.xlane.xlu0 %188
    %v190 = vsel %vm134, %v176, 0.0
    %v191 = vsel %vm134, %v180, 0.0
    %v192 = vadd.f32 %v190, %v191
    %193 = vadd.xlane.f32.xlu0 %v192
    %v194 = vpop.xlane.xlu0 %193
    %v195 = vrcp.pop %v189
    %v196 = vrcp.pop %v194
    %v199 = vlaneseq
    %v200 = vshrl.u32 %v199, 7
    %v201 = vsub.s32 0, %v200
    %v202 = vrot.slane %v195, %v201
    %v203 = vlaneseq
    %v204 = vshrl.u32 %v203, 7
    %v205 = vsub.s32 0, %v204
    %v206 = vrot.slane %v196, %v205
    %v209 = vmul.f32 %v160, %v202
    %v210 = vmul.f32 %v162, %v206
    %v213 = vlaneseq
    %v214 = vshrl.u32 %v213, 7
    %v215 = vsub.s32 0, %v214
    %v216 = vrot.slane %v209, %v215
    %v217 = vlaneseq
    %v218 = vshrl.u32 %v217, 7
    %v219 = vsub.s32 1, %v218
    %v220 = vrot.slane %v209, %v219
    %v221 = vlaneseq
    %v222 = vshrl.u32 %v221, 7
    %v223 = vsub.s32 0, %v222
    %v224 = vrot.slane %v210, %v223
    %v225 = vlaneseq
    %v226 = vshrl.u32 %v225, 7
    %v227 = vsub.s32 1, %v226
    %v228 = vrot.slane %v210, %v227
    %v229 = vcombine.low %v216, %v220
    %v230 = vcombine.low %v224, %v228
    %v233 = vmul.f32 %v29, %v229
    %v234 = vmul.f32 %v30, %v230
    %v237 = vcombine.high %v233, %v233
    %v238 = vcombine.high %v234, %v234
    %vm241 = vcmask 1043456
    %v242 = vsel %vm241, %v233, 0.0
    %v243 = vsel %vm241, %v237, 0.0
    %v244 = vadd.f32 %v242, %v243
    %245 = vadd.xlane.f32.xlu0 %v244
    %v246 = vpop.xlane.xlu0 %245
    %v247 = vsel %vm241, %v234, 0.0
    %v248 = vsel %vm241, %v238, 0.0
    %v249 = vadd.f32 %v247, %v248
    %250 = vadd.xlane.f32.xlu0 %v249
    %v251 = vpop.xlane.xlu0 %250
    %v252 = vld [vmem:[%s3] sm:$0xf]
    %v255 = vlaneseq
    %v256 = vand.u32 %v255, 127
    %v257 = vlaneseq
    %v258 = vshrl.u32 %v257, 7
    %v259 = vsub.s32 %v256, %v258
    %v260 = vrot.slane %v246, %v259
    %v261 = vlaneseq
    %v262 = vshrl.u32 %v261, 7
    %v263 = vsub.s32 %v256, %v262
    %v264 = vrot.slane %v251, %v263
    %vm265 = vcmask 1041409
    %v266 = vsel %vm265, %v264, %v260
    %vm267 = vcmask 31744
    %v268 = vsel %vm267, %v266, 0
    %v271 = vsel %vm241, %v252, 0
    %273 = vmatprep.subr.mxu0 0.0
    %274 = vmatpush1.msra.mxu0 %v271
    %275 = vmatprep.subr.mxu0 0.0
    %276 = vmatpush1.msra.mxu0 0.0
    %277 = vmatprep.subr.mxu0 0.0
    %278 = vmatpush1.msra.mxu0 0.0
    %279 = vmatprep.subr.mxu0 0.0
    %280 = vmatpush1.msra.mxu0 0.0
    %281 = vmatprep.subr.mxu0 0.0
    %282 = vmatpush1.msra.mxu0 0.0
    %283 = vmatprep.subr.mxu0 0.0
    %284 = vmatpush1.msra.mxu0 0.0
    %285 = vmatprep.subr.mxu0 0.0
    %286 = vmatpush1.msra.mxu0 0.0
    %287 = vmatprep.subr.mxu0 0.0
    %288 = vmatpush1.msra.mxu0 0.0
    %289 = vmatprep.subr.mxu0 0.0
    %290 = vmatpush1.msra.mxu0 0.0
    %291 = vmatprep.subr.mxu0 0.0
    %292 = vmatpush1.msra.mxu0 0.0
    %293 = vmatprep.subr.mxu0 0.0
    %294 = vmatpush1.msra.mxu0 0.0
    %295 = vmatprep.subr.mxu0 0.0
    %296 = vmatpush1.msra.mxu0 0.0
    %297 = vmatprep.subr.mxu0 0.0
    %298 = vmatpush1.msra.mxu0 0.0
    %299 = vmatprep.subr.mxu0 0.0
    %300 = vmatpush1.msra.mxu0 0.0
    %301 = vmatprep.subr.mxu0 0.0
    %302 = vmatpush1.msra.mxu0 0.0
    %303 = vmatprep.subr.mxu0 0.0
    %304 = vmatpush1.msra.mxu0 0.0
    %305 = vmatprep.subr.mxu0 0.0
    %306 = vmatpush1.msra.mxu0 0.0
    %307 = vmatprep.subr.mxu0 0.0
    %308 = vmatpush1.msra.mxu0 0.0
    %309 = vmatprep.subr.mxu0 0.0
    %310 = vmatpush1.msra.mxu0 0.0
    %311 = vmatprep.subr.mxu0 0.0
    %312 = vmatpush1.msra.mxu0 0.0
    %313 = vmatprep.subr.mxu0 0.0
    %314 = vmatpush1.msra.mxu0 0.0
    %315 = vmatprep.subr.mxu0 0.0
    %316 = vmatpush1.msra.mxu0 0.0
    %317 = vmatprep.subr.mxu0 0.0
    %318 = vmatpush1.msra.mxu0 0.0
    %319 = vmatprep.subr.mxu0 0.0
    %320 = vmatpush1.msra.mxu0 0.0
    %321 = vmatprep.subr.mxu0 0.0
    %322 = vmatpush1.msra.mxu0 0.0
    %323 = vmatprep.subr.mxu0 0.0
    %324 = vmatpush1.msra.mxu0 0.0
    %325 = vmatprep.subr.mxu0 0.0
    %326 = vmatpush1.msra.mxu0 0.0
    %327 = vmatprep.subr.mxu0 0.0
    %328 = vmatpush1.msra.mxu0 0.0
    %329 = vmatprep.subr.mxu0 0.0
    %330 = vmatpush1.msra.mxu0 0.0
    %331 = vmatprep.subr.mxu0 0.0
    %332 = vmatpush1.msra.mxu0 0.0
    %333 = vmatprep.subr.mxu0 0.0
    %334 = vmatpush1.msra.mxu0 0.0
    %335 = vmatprep.subr.mxu0 0.0
    %336 = vmatpush1.msra.mxu0 0.0
    %337 = vmatprep.mubr.f32.mxu0 0.0
    %338 = vmatmul.mubr.f32.gmra.mrb[0].mxu0 %v268
    %v339 = vpop.f32.mrb[0].mxu0
    %v340 = vadd.f32 0.0, %v339
    %v341 = vpop.f32.mrb[0].mxu0
    %342 = vdwg.mxu0
    %vm343 = vcmask 517120
    %v344 = vsel %vm343, %v340, 0.0
    %345 = vadd.xlane.f32.xlu0 %v344
    %v346 = vpop.xlane.xlu0 %345
    %v347 = vrcp.pop 64.0
    %v348 = vmul.f32 %v346, %v347
    %v349 = vsub.f32 %v340, %v348
    %v350 = vmul.f32 %v349, %v349
    %v351 = vsel %vm343, %v350, 0.0
    %352 = vadd.xlane.f32.xlu0 %v351
    %v353 = vpop.xlane.xlu0 %352
    %v354 = vmul.f32 %v353, %v347
    %v355 = vadd.f32 %v354, 1e-05
    %v356 = vrsqrt.pop %v355
    %v357 = vmul.f32 %v349, %v356
    %v358 = vld [vmem:[%s4] sm:$0x1]
    %v360 = vlaneseq
    %v361 = vshrl.u32 %v360, 7
    %v362 = vsub.s32 0, %v361
    %v363 = vrot.slane %v358, %v362
    %v365 = vmul.f32 %v357, %v363
    %v366 = vld [vmem:[%s5] sm:$0x1]
    %v368 = vlaneseq
    %v369 = vshrl.u32 %v368, 7
    %v370 = vsub.s32 0, %v369
    %v371 = vrot.slane %v366, %v370
    %v373 = vadd.f32 %v365, %v371
    %v374 = vmax.f32 %v373, 0.0
    %v375 = vld [vmem:[%s6] sm:$0xff]
    %v376 = vld [vmem:[%s6 + $0x8] sm:$0xff]
    %v377 = vld [vmem:[%s6 + $0x10] sm:$0xff]
    %v378 = vld [vmem:[%s6 + $0x18] sm:$0xff]
    %v379 = vld [vmem:[%s6 + $0x20] sm:$0xff]
    %v380 = vld [vmem:[%s6 + $0x28] sm:$0xff]
    %v381 = vld [vmem:[%s6 + $0x30] sm:$0xff]
    %v382 = vld [vmem:[%s6 + $0x38] sm:$0xff]
    %vm383 = vcmask 523264
    %v385 = vsel %vm383, %v374, 0
    %387 = vmatprep.subr.mxu0 0.0
    %388 = vmatpush1.msra.mxu0 %v375
    %389 = vmatprep.subr.mxu0 0.0
    %390 = vmatpush1.msra.mxu0 %v376
    %391 = vmatprep.subr.mxu0 0.0
    %392 = vmatpush1.msra.mxu0 %v377
    %393 = vmatprep.subr.mxu0 0.0
    %394 = vmatpush1.msra.mxu0 %v378
    %395 = vmatprep.subr.mxu0 0.0
    %396 = vmatpush1.msra.mxu0 %v379
    %397 = vmatprep.subr.mxu0 0.0
    %398 = vmatpush1.msra.mxu0 %v380
    %399 = vmatprep.subr.mxu0 0.0
    %400 = vmatpush1.msra.mxu0 %v381
    %401 = vmatprep.subr.mxu0 0.0
    %402 = vmatpush1.msra.mxu0 %v382
    %403 = vmatprep.subr.mxu0 0.0
    %404 = vmatpush1.msra.mxu0 0.0
    %405 = vmatprep.subr.mxu0 0.0
    %406 = vmatpush1.msra.mxu0 0.0
    %407 = vmatprep.subr.mxu0 0.0
    %408 = vmatpush1.msra.mxu0 0.0
    %409 = vmatprep.subr.mxu0 0.0
    %410 = vmatpush1.msra.mxu0 0.0
    %411 = vmatprep.subr.mxu0 0.0
    %412 = vmatpush1.msra.mxu0 0.0
    %413 = vmatprep.subr.mxu0 0.0
    %414 = vmatpush1.msra.mxu0 0.0
    %415 = vmatprep.subr.mxu0 0.0
    %416 = vmatpush1.msra.mxu0 0.0
    %417 = vmatprep.subr.mxu0 0.0
    %418 = vmatpush1.msra.mxu0 0.0
    %419 = vmatprep.subr.mxu0 0.0
    %420 = vmatpush1.msra.mxu0 0.0
    %421 = vmatprep.subr.mxu0 0.0
    %422 = vmatpush1.msra.mxu0 0.0
    %423 = vmatprep.subr.mxu0 0.0
    %424 = vmatpush1.msra.mxu0 0.0
    %425 = vmatprep.subr.mxu0 0.0
    %426 = vmatpush1.msra.mxu0 0.0
    %427 = vmatprep.subr.mxu0 0.0
    %428 = vmatpush1.msra.mxu0 0.0
    %429 = vmatprep.subr.mxu0 0.0
    %430 = vmatpush1.msra.mxu0 0.0
    %431 = vmatprep.subr.mxu0 0.0
    %432 = vmatpush1.msra.mxu0 0.0
    %433 = vmatprep.subr.mxu0 0.0
    %434 = vmatpush1.msra.mxu0 0.0
    %435 = vmatprep.subr.mxu0 0.0
    %436 = vmatpush1.msra.mxu0 0.0
    %437 = vmatprep.subr.mxu0 0.0
    %438 = vmatpush1.msra.mxu0 0.0
    %439 = vmatprep.subr.mxu0 0.0
    %440 = vmatpush1.msra.mxu0 0.0
    %441 = vmatprep.subr.mxu0 0.0
    %442 = vmatpush1.msra.mxu0 0.0
    %443 = vmatprep.subr.mxu0 0.0
    %444 = vmatpush1.msra.mxu0 0.0
    %445 = vmatprep.subr.mxu0 0.0
    %446 = vmatpush1.msra.mxu0 0.0
    %447 = vmatprep.subr.mxu0 0.0
    %448 = vmatpush1.msra.mxu0 0.0
    %449 = vmatprep.subr.mxu0 0.0
    %450 = vmatpush1.msra.mxu0 0.0
    %451 = vmatprep.mubr.f32.mxu0 0.0
    %452 = vmatmul.mubr.f32.gmra.mrb[0].mxu0 %v385
    %v453 = vpop.f32.mrb[0].mxu0
    %v454 = vadd.f32 0.0, %v453
    %v455 = vpop.f32.mrb[0].mxu0
    %456 = vdwg.mxu0
    %v457 = vlaneseq
    %v458 = vshrl.u32 %v457, 7
    %v459 = vsub.s32 0, %v458
    %v460 = vrot.slane %v454, %v459
    %462 = vbcast.lane.b32.xlu0 %v460, 256
    %v463 = vpop.permute.xlu0 %462
    %v464 = vlaneseq
    %v465 = vshrl.u32 %v464, 7
    %v466 = vsub.s32 1, %v465
    %v467 = vrot.slane %v454, %v466
    %469 = vbcast.lane.b32.xlu0 %v467, 256
    %v470 = vpop.permute.xlu0 %469
    %v474 = vunpack.c.l.s4 839922192
    %v475 = vunpack.c.0.s8 %v474
    %v476 = vlaneseq
    %v477 = vshrl.u32 %v476, 7
    %v478 = vsub.s32 %v475, %v477
    %v479 = vrot.slane %v463, %v478
    %v481 = vunpack.c.l.s4 839922192
    %v482 = vunpack.c.0.s8 %v481
    %v483 = vlaneseq
    %v484 = vshrl.u32 %v483, 7
    %v485 = vsub.s32 %v482, %v484
    %v486 = vrot.slane %v470, %v485
    %v489 = vadd.f32 %v29, %v479
    %v490 = vadd.f32 %v30, %v486
    %491 = vst [vmem:[#allocation3] sm:$0xff] %v489
    %492 = vst [vmem:[#allocation3 + $0x8] sm:$0xff] %v490
    // Predicated region
    $region30: #{tpu_custom_call.1} parent=1 // pred_check
      _
    $region31: #{tpu_custom_call.1} parent=1 // pred_check_branch
      %494 = sbr.rel (0) target = $region33
    $region32: #{tpu_custom_call.1} parent=1 // pred_region
      %s496 = ssub.s32 256, 256
      %497 = vsyncadd [#allocation4], %s496
      %s498 = sshll.u32 [#allocation3], 4
      %s499 = int_to_ptr.vmem [resolvable:$true] %s498
      %504 = dma.vmem_to_hbm [thread:$0]  %s499, 256, %s7, [#allocation4], 128, 128, 8
    $region33: #{tpu_custom_call.1} parent=1 // pred_fallthru
      _
    // Predicated region
    $region34: #{tpu_custom_call.1} parent=1 // pred_check
      _
    $region35: #{tpu_custom_call.1} parent=1 // pred_check_branch
      %506 = sbr.rel (0) target = $region37
    $region36: #{tpu_custom_call.1} parent=1 // pred_region
      %507 = dma.done [#allocation4], 256
    $region37: #{tpu_custom_call.1} parent=1 // pred_fallthru
      _
    %508 = vsyncpa [#allocation4], 1

</llo_original>
